<compile_context>
chip_gen: v6e
topology: v6e:2x2x1
jax: 0.10.0
libtpu: 0.0.40
codegen_flags: <defaults>
</compile_context>

<pallas_src>
import jax
import jax.numpy as jnp
from jax.experimental import pallas as pl
from jax.experimental.pallas import tpu as pltpu


def _scse_kernel(x_ref, chn_ref, ws_ref, bs_ref, o_ref):
    # x_ref block:   (C, T)   -- C on sublanes, HW-tile on lanes (batch dim squeezed)
    # chn_ref block: (C, 1)   -- precomputed channel-SE scale for this batch (f32)
    # ws_ref:        (C, 1)   -- spatial 1x1 conv weights (f32)
    # bs_ref:        (1, 1)   -- spatial 1x1 conv bias (f32)
    x = x_ref[...].astype(jnp.float32)                   # (C, T)
    chn = chn_ref[...]                                   # (C, 1)

    # ---- spatial excitation: 1x1 conv C->1 as VPU mul + sublane reduce ----
    spa = jnp.sum(x * ws_ref[...], axis=0, keepdims=True) + bs_ref[...]   # (1, T)
    spa = jax.nn.sigmoid(spa)                            # (1, T)

    # ---- fused scale: x*chn + x*spa == x * (chn + spa) ----
    o_ref[...] = (x * (chn + spa)).astype(o_ref.dtype)   # (C, T)


def _pick_hw_tile(hw, c, n, itemsize=4, max_bytes=2 << 20, max_lanes=2048):
    """Fixed lane tile: a multiple of 128, <= ~2 MiB per block, <= hw.
    The last ragged tile (hw % T != 0) is masked by Pallas."""
    if hw <= 128:
        return hw                                   # full-extent block (legal)
    t = (max_bytes // (itemsize * max(c, 1))) // 128 * 128
    t = max(128, min(t, max_lanes))
    t = min(t, (hw // 128) * 128)                   # never exceed the array extent
    # Megacore (v7x, 2 TCs): make sure the parallel grid has >= 2 steps if possible.
    while n * pl.cdiv(hw, t) < 2 and t > 128:
        t = max(128, (t // 2) // 128 * 128)
    return t


def scse_block(x_nchw, w1, b1, w2, b2, ws, bs, *, donate_x=False):
    """x_nchw: (N, C, H, W). Weights in matmul layout (f32):
       w1: (C, C//2), b1: (1, C//2), w2: (C//2, C), b2: (1, C),
       ws: (C, 1),    bs: (1, 1)."""
    N, C, H, W = x_nchw.shape
    HW = H * W
    x = x_nchw.reshape(N, C, HW)                         # free (contiguous) reshape

    # ---- channel excitation hoisted to XLA: O(N*C) work, keeps kernel streaming ----
    avg = jnp.mean(x.astype(jnp.float32), axis=2)        # (N, C) == AdaptiveAvgPool2d(1)
    h = jax.nn.relu(avg @ w1 + b1)                       # (N, C//2)
    chn = jax.nn.sigmoid(h @ w2 + b2)                    # (N, C)
    chn = chn[:, :, None].astype(jnp.float32)            # (N, C, 1)

    T = _pick_hw_tile(HW, C, N, itemsize=x.dtype.itemsize)
    grid = (N, pl.cdiv(HW, T))

    out = pl.pallas_call(
        _scse_kernel,
        out_shape=jax.ShapeDtypeStruct((N, C, HW), x.dtype),
        grid=grid,
        in_specs=[
            # x: streamed HW tiles, batch dim squeezed -> kernel sees (C, T)
            pl.BlockSpec((pl.Squeezed(), C, T), lambda n, t: (n, 0, t)),
            # chn: resident per batch -> (C, 1)
            pl.BlockSpec((pl.Squeezed(), C, 1), lambda n, t: (n, 0, 0)),
            # ws / bs: resident
            pl.BlockSpec((C, 1), lambda n, t: (0, 0)),
            pl.BlockSpec((1, 1), lambda n, t: (0, 0)),
        ],
        out_specs=pl.BlockSpec((pl.Squeezed(), C, T), lambda n, t: (n, 0, t)),
        input_output_aliases=({0: 0} if donate_x else {}),
        compiler_params=pltpu.CompilerParams(
            dimension_semantics=("parallel", "parallel"),   # no cross-tile reduction
            vmem_limit_bytes=32 * 1024 * 1024,              # fits v7x's 64 MiB VMEM
        ),
    )(x, chn, ws, bs)

    return out.reshape(N, C, H, W)


def _reference(x, w1, b1, w2, b2, ws, bs):
    # Pure-JAX reference mirroring the PyTorch forward (NCHW).
    avg = jnp.mean(x, axis=(2, 3))                               # (N, C)
    h = jax.nn.relu(avg @ w1 + b1)                               # (N, C//2)
    chn = jax.nn.sigmoid(h @ w2 + b2)[:, :, None, None]          # (N, C, 1, 1)
    xc = jnp.transpose(x, (0, 2, 3, 1))                          # (N, H, W, C)
    spa = jax.nn.sigmoid(xc @ ws + bs)                           # (N, H, W, 1)
    spa = jnp.transpose(spa, (0, 3, 1, 2))                       # (N, 1, H, W)
    return x * chn + x * spa


def _run_case(key, N, C, H, W):
    Cr = C // 2
    kx, k1, k2, k3, k4, k5, k6 = jax.random.split(key, 7)
    x = jax.random.normal(kx, (N, C, H, W), dtype=jnp.float32)
    w1 = jax.random.normal(k1, (C, Cr), dtype=jnp.float32) * 0.5   # Conv2d(C, C//2, 1)
    b1 = jax.random.normal(k2, (1, Cr), dtype=jnp.float32) * 0.1
    w2 = jax.random.normal(k3, (Cr, C), dtype=jnp.float32) * 0.5   # Conv2d(C//2, C, 1)
    b2 = jax.random.normal(k4, (1, C), dtype=jnp.float32) * 0.1
    ws = jax.random.normal(k5, (C, 1), dtype=jnp.float32) * 0.5    # Conv2d(C, 1, 1)
    bs = jax.random.normal(k6, (1, 1), dtype=jnp.float32) * 0.1

    out = jax.block_until_ready(scse_block(x, w1, b1, w2, b2, ws, bs))
    ref = _reference(x, w1, b1[0], w2, b2[0], ws, bs[0, 0])
    assert out.shape == (N, C, H, W)
    assert jnp.allclose(out, ref, atol=1e-5, rtol=1e-5)


if __name__ == "__main__":
    key = jax.random.PRNGKey(0)
    k_a, k_b = jax.random.split(key)

    # Small canonical case (HW a multiple of 128).
    _run_case(k_a, N=2, C=4, H=16, W=16)
    # HW not divisible by 128 -> exercises the ragged (masked) last tile path.
    _run_case(k_b, N=2, C=8, H=13, W=13)

    print("KERNEL_OK")
</pallas_src>

<mosaic_0001>
module attributes {stable_mosaic.version = 11 : i64} {
  func.func @_scse_kernel(%arg0: i32, %arg1: i32, %arg2: memref<1x4x256xf32, #tpu.memory_space<vmem>>, %arg3: memref<1x4x1xf32, #tpu.memory_space<vmem>>, %arg4: memref<4x1xf32, #tpu.memory_space<vmem>>, %arg5: memref<1x1xf32, #tpu.memory_space<vmem>>, %arg6: memref<1x4x256xf32, #tpu.memory_space<vmem>>) attributes {dimension_semantics = [#tpu.dimension_semantics<parallel>, #tpu.dimension_semantics<parallel>], iteration_bounds = array<i64: 2, 1>, scalar_prefetch = 0 : i64, scratch_operands = 0 : i64, tpu.core_type = #tpu.core_type<tc>, window_params = [{transform_indices = @transform_0, window_bounds = array<i64: 1, 4, 256>}, {transform_indices = @transform_1, window_bounds = array<i64: 1, 4, 1>}, {pipeline_mode = #tpu.pipeline_mode<synchronous>, transform_indices = @transform_2, window_bounds = array<i64: 4, 1>}, {pipeline_mode = #tpu.pipeline_mode<synchronous>, transform_indices = @transform_3, window_bounds = array<i64: 1, 1>}, {transform_indices = @transform_4, window_bounds = array<i64: 1, 4, 256>}]} {
    %c0 = arith.constant 0 : index
    %c0_0 = arith.constant 0 : index
    %c0_1 = arith.constant 0 : index
    %0 = vector.load %arg2[%c0, %c0_0, %c0_1] : memref<1x4x256xf32, #tpu.memory_space<vmem>>, vector<1x4x256xf32>
    %1 = vector.shape_cast %0 : vector<1x4x256xf32> to vector<4x256xf32>
    %c0_2 = arith.constant 0 : index
    %c0_3 = arith.constant 0 : index
    %c0_4 = arith.constant 0 : index
    %2 = vector.load %arg3[%c0_2, %c0_3, %c0_4] : memref<1x4x1xf32, #tpu.memory_space<vmem>>, vector<1x4x1xf32>
    %3 = vector.shape_cast %2 : vector<1x4x1xf32> to vector<4x1xf32>
    %c0_5 = arith.constant 0 : index
    %c0_6 = arith.constant 0 : index
    %4 = vector.load %arg4[%c0_5, %c0_6] : memref<4x1xf32, #tpu.memory_space<vmem>>, vector<4x1xf32>
    %5 = vector.broadcast %4 : vector<4x1xf32> to vector<4x256xf32>
    %6 = arith.mulf %1, %5 : vector<4x256xf32>
    %cst = arith.constant dense<0.000000e+00> : vector<256xf32>
    %7 = vector.multi_reduction <add>, %6, %cst [0] : vector<4x256xf32> to vector<256xf32>
    %8 = vector.shape_cast %7 : vector<256xf32> to vector<1x256xf32>
    %c0_7 = arith.constant 0 : index
    %c0_8 = arith.constant 0 : index
    %9 = vector.load %arg5[%c0_7, %c0_8] : memref<1x1xf32, #tpu.memory_space<vmem>>, vector<1x1xf32>
    %10 = vector.broadcast %9 : vector<1x1xf32> to vector<1x256xf32>
    %11 = arith.addf %8, %10 : vector<1x256xf32>
    %12 = arith.negf %11 : vector<1x256xf32>
    %13 = math.exp %12 : vector<1x256xf32>
    %cst_9 = arith.constant 1.000000e+00 : f32
    %14 = vector.broadcast %cst_9 : f32 to vector<1x256xf32>
    %15 = arith.addf %14, %13 : vector<1x256xf32>
    %16 = arith.divf %14, %15 : vector<1x256xf32>
    %17 = vector.broadcast %3 : vector<4x1xf32> to vector<4x256xf32>
    %18 = vector.broadcast %16 : vector<1x256xf32> to vector<4x256xf32>
    %19 = arith.addf %17, %18 : vector<4x256xf32>
    %20 = arith.mulf %1, %19 : vector<4x256xf32>
    %c0_10 = arith.constant 0 : index
    %c0_11 = arith.constant 0 : index
    %c0_12 = arith.constant 0 : index
    %21 = vector.load %arg6[%c0_10, %c0_11, %c0_12] : memref<1x4x256xf32, #tpu.memory_space<vmem>>, vector<1x4x256xf32>
    %22 = vector.shape_cast %21 : vector<1x4x256xf32> to vector<4x256xf32>
    %23 = vector.shape_cast %20 : vector<4x256xf32> to vector<1x4x256xf32>
    tpu.vector_store %arg6[%c0_10, %c0_11, %c0_12], %23 {strides = array<i32>} : memref<1x4x256xf32, #tpu.memory_space<vmem>>, vector<1x4x256xf32>,
    return
  }
  func.func @transform_0(%arg0: i32, %arg1: i32) -> (i32, i32, i32) {
    %c0_i32 = arith.constant 0 : i32
    %c0_i32_0 = arith.constant 0 : i32
    return %arg0, %c0_i32, %arg1 : i32, i32, i32
  }
  func.func @transform_1(%arg0: i32, %arg1: i32) -> (i32, i32, i32) {
    %c0_i32 = arith.constant 0 : i32
    %c0_i32_0 = arith.constant 0 : i32
    %c0_i32_1 = arith.constant 0 : i32
    return %arg0, %c0_i32, %c0_i32_0 : i32, i32, i32
  }
  func.func @transform_2(%arg0: i32, %arg1: i32) -> (i32, i32) {
    %c0_i32 = arith.constant 0 : i32
    %c0_i32_0 = arith.constant 0 : i32
    %c0_i32_1 = arith.constant 0 : i32
    return %c0_i32, %c0_i32_0 : i32, i32
  }
  func.func @transform_3(%arg0: i32, %arg1: i32) -> (i32, i32) {
    %c0_i32 = arith.constant 0 : i32
    %c0_i32_0 = arith.constant 0 : i32
    %c0_i32_1 = arith.constant 0 : i32
    return %c0_i32, %c0_i32_0 : i32, i32
  }
  func.func @transform_4(%arg0: i32, %arg1: i32) -> (i32, i32, i32) {
    %c0_i32 = arith.constant 0 : i32
    %c0_i32_0 = arith.constant 0 : i32
    return %arg0, %c0_i32, %arg1 : i32, i32, i32
  }
}

</mosaic_0001>

<llo_original>
// kernel: tpu_custom_call.1
$region0: #{tpu_custom_call.1}
  #allocation0 [shape = 'u32[]', space=smem, size = 0x4, offset = 0x4, fixed_abs, tag = 'smem constant byte address 0x4 - core index']
  #allocation1 [shape = 'u32[144,128]{1,0:T(1,128)}', space=vmem, size = 0x12000, scoped, tag = 'internal scratch']
  #allocation2 [shape = 'f32[1,1]{1,0:T(1,128)S(1)}', space=vmem, size = 0x200, scoped, tag = 'scoped memory for tpu_custom_call.1']
  %s0 = inlined_call_operand.vmem [shape: f32[2,4,256], index: 0, kind: input, shape index: {}]
  %s1 = inlined_call_operand.vmem [shape: f32[2,4,1], index: 1, kind: input, shape index: {}]
  %s2 = inlined_call_operand.vmem [shape: f32[4,1], index: 2, kind: input, shape index: {}]
  %s3 = inlined_call_operand.<no memory space> [shape: f32[1,1], index: 3, kind: input, shape index: {}]
  %s4 = inlined_call_operand.hbm [shape: f32[2,4,256], index: 4, kind: output, shape index: {}]
  %s5 = sld [smem:[#allocation0]]
  $region49: #{tpu_custom_call.1} parent=0
    _
  %s7 = ssub.s32 1, %s5
  %s8 = scalar_select 0, %s7, %s5
  %v9 = vstv %s3
  %10 = vst [vmem:[#allocation2] sm:$0x1] %v9
  $region1: #{tpu_custom_call.1} parent=0
    #allocation3 [shape = 'u8[8192]{0}', space=vmem, size = 0x2000, scoped, tag = 'output window, operand 0']
    #allocation4 [shape = 's32[2]{0}', space=sflag, size = 0x8, scoped, tag = 'scoped memory for tpu_custom_call.1']
    %11 = vsyncpa [#allocation4], 0
    %s12 = scalar_lea.sflag [#allocation4], 1
    %13 = vsyncpa %s12, 0
    loop: start=0, step=1, limit=4
    $region2: #{tpu_custom_call.1} parent=1 // loop_pre_header
      _
    $region3: #{tpu_custom_call.1} parent=1 // loop_header
      %s15 = sphi 0, %s19
      %p16 = scmp.ge.s32.totalorder %s15, 4
      %s22 = sphi 0, %s34
      %s23 = sphi 0, %s30
      %s24 = sphi 0, %s22
      %s25 = sphi 0, %s23
      %s26 = sphi 0, %s24
      %s27 = sphi 0, %s25
      %s39 = sphi 0, %s41
      %s42 = sphi 0, %s39
      %s43 = sphi 0, %s42
      %s59 = sphi 0, %s43
      %s65 = sphi 0, %s67
      %s68 = sphi 0, %s65
      %s69 = sphi 0, %s68
      %s85 = sphi 0, %s69
      %s89 = sphi 0, %s89
      %s91 = sphi 0, %s89
      %s92 = sphi 0, %s91
      %s106 = sphi 0, %s92
      %s110 = sphi 0, %s110
      %s112 = sphi 0, %s110
      %s113 = sphi 0, %s112
      %s127 = sphi 0, %s113
      %s135 = sphi 0, %s137
      %s138 = sphi 0, %s135
      %s139 = sphi 0, %s138
      %s155 = sphi 0, %s139
    $region4: #{tpu_custom_call.1} parent=1 // loop_header_branch
      %18 = sbr.rel (%p16) target = $region8
    $region5: #{tpu_custom_call.1} parent=1 // loop_body
      %s20 = ssub.s32 %s15, 1
      %s21 = ssub.s32 %s15, 2
      %s28 = sadd.s32 1, %s23
      %p29 = scmp.ge.s32.totalorder %s28, 1
      %s30 = scalar_select %p29, 0, %s28
      %s31 = sadd.s32 1, %s22
      %s32 = scalar_select %p29, %s31, %s22
      %p33 = scmp.ge.s32.totalorder %s32, 2
      %s34 = scalar_select %p33, 0, %s32
      %s35 = ssub.s32 %s22, %s34
      %s36 = ssub.s32 %s23, %s30
      %s37 = sor.u32 %s35, %s36
      %p38 = scmp.eq.s32.totalorder %s37, 0
      %s40 = sadd.s32 %s39, 1
      %s41 = scalar_select %p38, %s39, %s40
      %p44 = pneg %p38
      %p45 = scmp.eq.s32.totalorder %s15, 1
      %p46 = por %p44, %p45
      %p47 = scmp.ne.s32.totalorder %s39, %s42
      %p48 = scmp.eq.s32.totalorder %s15, 0
      %p49 = por %p47, %p48
      %p50 = scmp.ne.s32.totalorder %s39, %s42
      %p51 = scmp.eq.s32.totalorder %s20, 1
      %p52 = por %p50, %p51
      %p53 = scmp.ne.s32.totalorder %s42, %s43
      %p54 = scmp.eq.s32.totalorder %s20, 0
      %p55 = por %p53, %p54
      %p56 = scmp.ne.s32.totalorder %s42, %s43
      %p57 = scmp.eq.s32.totalorder %s21, 1
      %p58 = por %p56, %p57
      %p60 = scmp.ne.s32.totalorder %s43, %s59
      %p61 = scmp.eq.s32.totalorder %s21, 0
      %p62 = por %p60, %p61
      %s63 = ssub.s32 %s22, %s34
      %p64 = scmp.eq.s32.totalorder %s63, 0
      %s66 = sadd.s32 %s65, 1
      %s67 = scalar_select %p64, %s65, %s66
      %p70 = pneg %p64
      %p71 = scmp.eq.s32.totalorder %s15, 1
      %p72 = por %p70, %p71
      %p73 = scmp.ne.s32.totalorder %s65, %s68
      %p74 = scmp.eq.s32.totalorder %s15, 0
      %p75 = por %p73, %p74
      %p76 = scmp.ne.s32.totalorder %s65, %s68
      %p77 = scmp.eq.s32.totalorder %s20, 1
      %p78 = por %p76, %p77
      %p79 = scmp.ne.s32.totalorder %s68, %s69
      %p80 = scmp.eq.s32.totalorder %s20, 0
      %p81 = por %p79, %p80
      %p82 = scmp.ne.s32.totalorder %s68, %s69
      %p83 = scmp.eq.s32.totalorder %s21, 1
      %p84 = por %p82, %p83
      %p86 = scmp.ne.s32.totalorder %s69, %s85
      %p87 = scmp.eq.s32.totalorder %s21, 0
      %p88 = por %p86, %p87
      %s90 = sadd.s32 %s89, 1
      %p93 = scmp.eq.s32.totalorder %s15, 1
      %p94 = scmp.ne.s32.totalorder %s89, %s91
      %p95 = scmp.eq.s32.totalorder %s15, 0
      %p96 = por %p94, %p95
      %p97 = scmp.ne.s32.totalorder %s89, %s91
      %p98 = scmp.eq.s32.totalorder %s20, 1
      %p99 = por %p97, %p98
      %p100 = scmp.ne.s32.totalorder %s91, %s92
      %p101 = scmp.eq.s32.totalorder %s20, 0
      %p102 = por %p100, %p101
      %p103 = scmp.ne.s32.totalorder %s91, %s92
      %p104 = scmp.eq.s32.totalorder %s21, 1
      %p105 = por %p103, %p104
      %p107 = scmp.ne.s32.totalorder %s92, %s106
      %p108 = scmp.eq.s32.totalorder %s21, 0
      %p109 = por %p107, %p108
      %s111 = sadd.s32 %s110, 1
      %p114 = scmp.eq.s32.totalorder %s15, 1
      %p115 = scmp.ne.s32.totalorder %s110, %s112
      %p116 = scmp.eq.s32.totalorder %s15, 0
      %p117 = por %p115, %p116
      %p118 = scmp.ne.s32.totalorder %s110, %s112
      %p119 = scmp.eq.s32.totalorder %s20, 1
      %p120 = por %p118, %p119
      %p121 = scmp.ne.s32.totalorder %s112, %s113
      %p122 = scmp.eq.s32.totalorder %s20, 0
      %p123 = por %p121, %p122
      %p124 = scmp.ne.s32.totalorder %s112, %s113
      %p125 = scmp.eq.s32.totalorder %s21, 1
      %p126 = por %p124, %p125
      %p128 = scmp.ne.s32.totalorder %s113, %s127
      %p129 = scmp.eq.s32.totalorder %s21, 0
      %p130 = por %p128, %p129
      %s131 = ssub.s32 %s22, %s34
      %s132 = ssub.s32 %s23, %s30
      %s133 = sor.u32 %s131, %s132
      %p134 = scmp.eq.s32.totalorder %s133, 0
      %s136 = sadd.s32 %s135, 1
      %s137 = scalar_select %p134, %s135, %s136
      %p140 = pneg %p134
      %p141 = scmp.eq.s32.totalorder %s15, 1
      %p142 = por %p140, %p141
      %p143 = scmp.ne.s32.totalorder %s135, %s138
      %p144 = scmp.eq.s32.totalorder %s15, 0
      %p145 = por %p143, %p144
      %p146 = scmp.ne.s32.totalorder %s135, %s138
      %p147 = scmp.eq.s32.totalorder %s20, 1
      %p148 = por %p146, %p147
      %p149 = scmp.ne.s32.totalorder %s138, %s139
      %p150 = scmp.eq.s32.totalorder %s20, 0
      %p151 = por %p149, %p150
      %p152 = scmp.ne.s32.totalorder %s138, %s139
      %p153 = scmp.eq.s32.totalorder %s21, 1
      %p154 = por %p152, %p153
      %p156 = scmp.ne.s32.totalorder %s139, %s155
      %p157 = scmp.eq.s32.totalorder %s21, 0
      %p158 = por %p156, %p157
      %p159 = scmp.le.s32.totalorder 1, %s15
      %p160 = scmp.lt.s32.totalorder %s15, 3
      %p161 = pnand %p159, %p160
      %p162 = pneg %p161
      // Predicated region
      $region9: #{tpu_custom_call.1} parent=5 // pred_check
        _
      $region10: #{tpu_custom_call.1} parent=5 // pred_check_branch
        %164 = sbr.rel (%p161) target = $region12
      $region11: #{tpu_custom_call.1} parent=5 // pred_region
        %s165 = ssub.s32 %s15, 1
        // Predicated region
        $region13: #{tpu_custom_call.1} parent=11 // pred_check
          %p166 = pneg %p102
        $region14: #{tpu_custom_call.1} parent=11 // pred_check_branch
          %168 = sbr.rel (%p166) target = $region16
        $region15: #{tpu_custom_call.1} parent=11 // pred_region
          _
        $region16: #{tpu_custom_call.1} parent=11 // pred_fallthru
          _
        // Predicated region
        $region17: #{tpu_custom_call.1} parent=11 // pred_check
          %p169 = pneg %p123
        $region18: #{tpu_custom_call.1} parent=11 // pred_check_branch
          %171 = sbr.rel (%p169) target = $region20
        $region19: #{tpu_custom_call.1} parent=11 // pred_region
          _
        $region20: #{tpu_custom_call.1} parent=11 // pred_fallthru
          _
      $region12: #{tpu_custom_call.1} parent=5 // pred_fallthru
        _
      %p172 = scmp.lt.s32.totalorder %s15, 2
      // Predicated region
      $region21: #{tpu_custom_call.1} parent=5 // pred_check
        %p173 = pneg %p172
      $region22: #{tpu_custom_call.1} parent=5 // pred_check_branch
        %175 = sbr.rel (%p173) target = $region24
      $region23: #{tpu_custom_call.1} parent=5 // pred_region
        // Predicated region
        $region25: #{tpu_custom_call.1} parent=23 // pred_check
          %p176 = pneg %p49
        $region26: #{tpu_custom_call.1} parent=23 // pred_check_branch
          %178 = sbr.rel (%p176) target = $region28
        $region27: #{tpu_custom_call.1} parent=23 // pred_region
          %s179 = smul.u32 2, %s23
          %p180 = scmp.lt.s32.totalorder %s22, 1
          %s181 = scalar_select %p180, %s22, 1
          %p182 = scmp.lt.s32.totalorder %s179, 1
          %s183 = scalar_select %p182, %s179, 1
          %s184 = smul.addr %s181, 2
          %s185 = sadd.s32 %s183, %s184
          %s186 = smul.addr %s185, 4
          %s187 = scalar_lea.vmem %s0, %s186
          %s188 = smul.u32 2, %s23
        $region28: #{tpu_custom_call.1} parent=23 // pred_fallthru
          _
        // Predicated region
        $region29: #{tpu_custom_call.1} parent=23 // pred_check
          %p189 = pneg %p75
        $region30: #{tpu_custom_call.1} parent=23 // pred_check_branch
          %191 = sbr.rel (%p189) target = $region32
        $region31: #{tpu_custom_call.1} parent=23 // pred_region
          %p192 = scmp.lt.s32.totalorder %s22, 1
          %s193 = scalar_select %p192, %s22, 1
          %s194 = smul.addr %s193, 4
          %s195 = scalar_lea.vmem %s1, %s194
        $region32: #{tpu_custom_call.1} parent=23 // pred_fallthru
          _
      $region24: #{tpu_custom_call.1} parent=5 // pred_fallthru
        _
      %p196 = scmp.le.s32.totalorder 1, %s15
      %p197 = scmp.lt.s32.totalorder %s15, 3
      %p198 = pnand %p196, %p197
      %p199 = pneg %p198
      // Predicated region
      $region33: #{tpu_custom_call.1} parent=5 // pred_check
        _
      $region34: #{tpu_custom_call.1} parent=5 // pred_check_branch
        %201 = sbr.rel (%p198) target = $region36
      $region35: #{tpu_custom_call.1} parent=5 // pred_region
        %s202 = ssub.s32 %s15, 1
        %s203 = smul.u32 2, %s25
        %p204 = scmp.lt.s32.totalorder %s24, 1
        %s205 = scalar_select %p204, %s24, 1
        %p206 = scmp.lt.s32.totalorder %s203, 1
        %s207 = scalar_select %p206, %s203, 1
        %s208 = smul.addr %s205, 2
        %s209 = sadd.s32 %s207, %s208
        %s210 = smul.addr %s209, 4
        %s211 = scalar_lea.vmem %s0, %s210
        %p212 = pneg %p55
        %p213 = pneg %p52
        %p214 = scmp.lt.s32.totalorder %s24, 1
        %s215 = scalar_select %p214, %s24, 1
        %s216 = smul.addr %s215, 4
        %s217 = scalar_lea.vmem %s1, %s216
        %p218 = pneg %p81
        %p219 = pneg %p78
        %p220 = pneg %p102
        %p221 = pneg %p99
        %p222 = pneg %p123
        %p223 = pneg %p120
        %p224 = pneg %p151
        %p225 = pneg %p148
        %s226 = sand.u32 %s138, 1
        %s227 = scalar_lea.sflag [#allocation4], %s226
        %s228 = sand.u32 %s138, 1
        %s229 = smul.addr %s228, 8
        %s230 = scalar_lea.vmem [#allocation3], %s229
        %s231 = smul.u32 2, %s25
        %p232 = scmp.lt.s32.totalorder %s24, 1
        %s233 = scalar_select %p232, %s24, 1
        %p234 = scmp.lt.s32.totalorder %s231, 1
        %s235 = scalar_select %p234, %s231, 1
        %s236 = smul.addr %s233, 2
        %s237 = sadd.s32 %s235, %s236
        %s238 = smul.addr %s237, 4
        %s239 = scalar_lea.vmem %s0, %s238
        %s240 = smul.u32 2, %s25
        %p241 = scmp.lt.s32.totalorder %s24, 1
        %s242 = scalar_select %p241, %s24, 1
        %s243 = smul.addr %s242, 4
        %s244 = scalar_lea.vmem %s1, %s243
        %s245 = smul.u32 2, %s25
        %v246 = vld [vmem:[%s239] sm:$0xff]
        %v247 = vld [vmem:[%s244] sm:$0xf]
        %v248 = vld [vmem:[%s2] sm:$0xf]
        %250 = vset.pattern.permute.xlu0 0
        %251 = vperm.xlu0 %250, %v248
        %v252 = vpop.permute.xlu0 %251
        %v254 = vunpack.c.l.s4 839922192
        %v255 = vunpack.c.0.s8 %v254
        %v256 = vlaneseq
        %v257 = vshrl.u32 %v256, 7
        %v258 = vsub.s32 %v255, %v257
        %v259 = vrot.slane %v252, %v258
        %v261 = vmul.f32 %v246, %v259
        %v263 = vcombine.high %v261, %v261
        %vm265 = vcmask 1043456
        %v266 = vsel %vm265, %v261, 0.0
        %v267 = vrot.slane %v266, 4
        %v268 = vadd.f32 %v266, %v267
        %v269 = vrot.slane %v268, 2
        %v270 = vadd.f32 %v268, %v269
        %v271 = vrot.slane %v270, 1
        %v272 = vadd.f32 %v270, %v271
        %v273 = vsel %vm265, %v263, 0.0
        %v274 = vrot.slane %v273, 4
        %v275 = vadd.f32 %v273, %v274
        %v276 = vrot.slane %v275, 2
        %v277 = vadd.f32 %v275, %v276
        %v278 = vrot.slane %v277, 1
        %v279 = vadd.f32 %v277, %v278
        %v280 = vld [vmem:[#allocation2] sm:$0x1]
        %282 = vset.pattern.permute.xlu0 0
        %283 = vperm.xlu0 %282, %v280
        %v284 = vpop.permute.xlu0 %283
        %v286 = vlaneseq
        %v287 = vshrl.u32 %v286, 7
        %v288 = vsub.s32 0, %v287
        %v289 = vrot.slane %v284, %v288
        %v290 = vadd.f32 %v272, %v289
        %v291 = vadd.f32 %v279, %v289
        %v292 = vxor.u32 %v290, 2147483648
        %v293 = vxor.u32 %v291, 2147483648
        %v294 = vmul.f32 %v292, 1.442695
        %v295 = vpow.pop %v294
        %v296 = vmul.f32 %v293, 1.442695
        %v297 = vpow.pop %v296
        %v298 = vadd.f32 %v295, 1.0
        %v299 = vadd.f32 %v297, 1.0
        %v300 = vrcp.pop %v298
        %v301 = vmul.f32 1.0, %v300
        %v302 = vrcp.pop %v299
        %v303 = vmul.f32 1.0, %v302
        %305 = vset.pattern.permute.xlu0 0
        %306 = vperm.xlu0 %305, %v247
        %v307 = vpop.permute.xlu0 %306
        %v309 = vadd.f32 %v307, %v301
        %v310 = vadd.f32 %v307, %v303
        %v313 = vcombine.low %v309, %v310
        %v315 = vmul.f32 %v246, %v313
        %316 = vst [vmem:[%s230] sm:$0xff] %v315
        %s317 = sand.u32 %s138, 1
        %s318 = scalar_lea.sflag [#allocation4], %s317
        %s319 = sand.u32 %s138, 1
        %s320 = smul.addr %s319, 8
        %s321 = scalar_lea.vmem [#allocation3], %s320
        // Predicated region
        $region37: #{tpu_custom_call.1} parent=35 // pred_check
          %p322 = pneg %p148
        $region38: #{tpu_custom_call.1} parent=35 // pred_check_branch
          %324 = sbr.rel (%p322) target = $region40
        $region39: #{tpu_custom_call.1} parent=35 // pred_region
          %s325 = smul.u32 2, %s25
          %s327 = ssub.s32 128, 128
          %328 = vsyncadd %s318, %s327
          %s329 = smul.addr %s24, 2
          %s330 = sadd.s32 %s325, %s329
          %s331 = smul.addr %s330, 64
          %s332 = scalar_lea.hbm %s4, %s331
          %s334 = sshll.u32 %s321, 4
          %s335 = int_to_ptr.vmem [resolvable:$true] %s334
          %337 = dma.vmem_to_hbm [thread:$0]  %s335, 128, %s332, %s318
        $region40: #{tpu_custom_call.1} parent=35 // pred_fallthru
          _
      $region36: #{tpu_custom_call.1} parent=5 // pred_fallthru
        _
      %p338 = scmp.le.s32.totalorder 2, %s15
      // Predicated region
      $region41: #{tpu_custom_call.1} parent=5 // pred_check
        %p339 = pneg %p338
      $region42: #{tpu_custom_call.1} parent=5 // pred_check_branch
        %341 = sbr.rel (%p339) target = $region44
      $region43: #{tpu_custom_call.1} parent=5 // pred_region
        %s342 = ssub.s32 %s15, 2
        // Predicated region
        $region45: #{tpu_custom_call.1} parent=43 // pred_check
          %p343 = pneg %p154
        $region46: #{tpu_custom_call.1} parent=43 // pred_check_branch
          %345 = sbr.rel (%p343) target = $region48
        $region47: #{tpu_custom_call.1} parent=43 // pred_region
          %s346 = sand.u32 %s139, 1
          %s347 = scalar_lea.sflag [#allocation4], %s346
          %s348 = sand.u32 %s139, 1
          %s349 = smul.addr %s348, 8
          %s350 = scalar_lea.vmem [#allocation3], %s349
          %351 = dma.done %s347, 128
        $region48: #{tpu_custom_call.1} parent=43 // pred_fallthru
          _
      $region44: #{tpu_custom_call.1} parent=5 // pred_fallthru
        _
    $region6: #{tpu_custom_call.1} parent=1 // loop_footer
      %s19 = sadd.s32 1, %s15
    $region7: #{tpu_custom_call.1} parent=1 // loop_footer_branch
      %14 = sbr.rel target = $region3
    $region8: #{tpu_custom_call.1} parent=1 // loop_exit
      _
    %352 = vsyncpa [#allocation4], 1
    %s353 = scalar_lea.sflag [#allocation4], 1
    %354 = vsyncpa %s353, 1

</llo_original>
